<compile_context>
chip_gen: v7x
topology: tpu7x:2x2x1
jax: 0.10.0
libtpu: 0.0.40
codegen_flags: <defaults>
</compile_context>

<pallas_src>
import jax
import jax.numpy as jnp
from jax.experimental import pallas as pl
from jax.experimental.pallas import tpu as pltpu


def _add_pe_kernel(x_ref, pe_ref, o_ref):
    # Pure streaming add; compute in f32, cast last (no-op for f32 inputs).
    # pe broadcasts over the leading batch-tile / sublane axis.
    o_ref[...] = (x_ref[...].astype(jnp.float32)
                  + pe_ref[...].astype(jnp.float32)).astype(o_ref.dtype)


def _sinusoidal_pe(n, c):
    """Standard sinusoidal table, shape (n, c), float32 (computed once)."""
    pos = jnp.arange(n, dtype=jnp.float32)[:, None]
    dim = jnp.arange(c)[None, :]
    pair = (dim // 2).astype(jnp.float32)
    inv_freq = jnp.exp(-(2.0 * pair / float(c)) * jnp.log(10000.0))
    angle = pos * inv_freq
    return jnp.where((dim % 2) == 0, jnp.sin(angle), jnp.cos(angle))


def _scoped_vmem_bytes():
    """Generation-aware scoped-VMEM cap, always an explicit value."""
    try:
        cap = int(pltpu.get_tpu_info().vmem_capacity_bytes)
    except Exception:
        cap = None
    if cap is None:
        # Explicit fallback (fits v7x's 64 MiB physical VMEM) so tiling does
        # not depend on where tracing happens.
        return 48 * 1024 * 1024
    if cap >= 96 * 1024 * 1024:          # v5e / v6e: 128 MiB physical VMEM
        return 96 * 1024 * 1024
    return min(48 * 1024 * 1024, (cap * 3) // 4)   # v7x: 64 MiB physical


def _block_budget(scoped, target_block_bytes):
    # Per x-block byte budget.  ~8 live buffers: 2x x + 2x out + 2x PE (f32,
    # possibly wider than an x block) with headroom.
    usable = (scoped * 3) // 4
    return max(1, min(int(target_block_bytes), usable // 8))


def _launch(x_in, pe_in, x_spec, pe_spec, out_spec, grid, vmem_limit, in_place):
    kwargs = {}
    if in_place:
        # Only useful when the caller donates x (jax.jit(..., donate_argnums=0)).
        kwargs["input_output_aliases"] = {0: 0}
    return pl.pallas_call(
        _add_pe_kernel,
        out_shape=jax.ShapeDtypeStruct(x_in.shape, x_in.dtype),
        grid_spec=pltpu.PrefetchScalarGridSpec(
            num_scalar_prefetch=0,
            grid=grid,
            in_specs=[x_spec, pe_spec],
            out_specs=out_spec,
        ),
        compiler_params=pltpu.CompilerParams(
            dimension_semantics=("parallel",) * len(grid),
            vmem_limit_bytes=vmem_limit,
        ),
        **kwargs,
    )(x_in, pe_in)


def _add_pos_enc_3d(x3, pe, *, in_place, target_block_bytes):
    """x3: (BT, N, C) with C % 128 == 0 (lane-aligned)."""
    bt, n, c = x3.shape
    itemsize = x3.dtype.itemsize
    scoped = _scoped_vmem_bytes()
    budget = _block_budget(scoped, target_block_bytes)

    slab = n * c * itemsize                      # one (n, c) slab of x
    if slab <= budget:
        # Whole N axis per step; fold several batch elements per grid step to
        # amortize the fixed per-step overhead.
        ts = n
        tb = int(min(bt, max(1, budget // slab)))
    else:
        # Split the N axis into multiple-of-8 tiles; ragged last tile is
        # handled by the cdiv grid (OOB writes dropped).
        tb = 1
        ts = max(8, (budget // (c * itemsize)) // 8 * 8)
        ts = min(ts, n)

    num_s = pl.cdiv(n, ts)
    num_b = pl.cdiv(bt, tb)
    if num_s > 1:
        # PE-residency-friendly: N-tiles outer, batch inner (PE block index
        # is constant over the inner axis -> fetched once per N-tile).
        grid = (num_s, num_b)
        x_map = lambda s, b: (b, s, 0)
        pe_map = lambda s, b: (s, 0)
    else:
        # Avoid a size-1 outermost parallel axis (v7x megacore sharding).
        grid = (num_b, num_s)
        x_map = lambda b, s: (b, s, 0)
        pe_map = lambda b, s: (s, 0)

    x_spec = pl.BlockSpec((tb, ts, c), x_map)
    pe_spec = pl.BlockSpec((ts, c), pe_map)
    out_spec = pl.BlockSpec((tb, ts, c), x_map)
    return _launch(x3, pe, x_spec, pe_spec, out_spec, grid, scoped, in_place)


def _add_pos_enc_flat(x3, pe, *, in_place, target_block_bytes):
    """Lane-dense path for C % 128 != 0: flatten (N, C) into the lane axis."""
    bt, n, c = x3.shape
    l = n * c
    xf = x3.reshape(bt, l)
    pef = pe.reshape(1, l)
    itemsize = x3.dtype.itemsize
    scoped = _scoped_vmem_bytes()
    budget = _block_budget(scoped, target_block_bytes)

    rows_min = bt if bt < 8 else 8
    if l % 128 == 0:
        tl = min(l, max(128, (budget // (rows_min * itemsize)) // 128 * 128))
    else:
        tl = l  # full (non-aligned) last dim is always allowed

    # Block the BT axis too: >= 8 rows per step (or the whole BT if smaller).
    tr = int(min(bt, max(1, budget // (tl * itemsize))))
    if tr < bt:
        tr = max(8, (tr // 8) * 8) if bt >= 8 else bt
    tr = min(tr, bt)

    num_l = pl.cdiv(l, tl)
    num_r = pl.cdiv(bt, tr)
    if num_l > 1:
        grid = (num_l, num_r)
        x_map = lambda li, ri: (ri, li)
        pe_map = lambda li, ri: (0, li)
    else:
        grid = (num_r, num_l)
        x_map = lambda ri, li: (ri, li)
        pe_map = lambda ri, li: (0, li)

    x_spec = pl.BlockSpec((tr, tl), x_map)
    pe_spec = pl.BlockSpec((1, tl), pe_map)
    out_spec = pl.BlockSpec((tr, tl), x_map)
    out = _launch(xf, pef, x_spec, pe_spec, out_spec, grid, scoped, in_place)
    return out.reshape(bt, n, c)


def spatial_encoder(x, mask=None, *, in_place=False,
                    target_block_bytes=4 * 1024 * 1024):
    """x: (B, T, N, C) -> x + sinusoidal positional encoding over the N axis.

    in_place=True aliases the output onto x's HBM buffer; it only saves
    footprint if the caller donates x (jax.jit(..., donate_argnums=0)).
    """
    del mask  # TODO(synk): mask / Attn_Block semantics are not defined in the spec.
    b, t, n, c = x.shape
    pe = _sinusoidal_pe(n, c)
    x3 = x.reshape(b * t, n, c)
    if c % 128 == 0:
        y3 = _add_pos_enc_3d(x3, pe, in_place=in_place,
                             target_block_bytes=target_block_bytes)
    else:
        y3 = _add_pos_enc_flat(x3, pe, in_place=in_place,
                               target_block_bytes=target_block_bytes)
    return y3.reshape(b, t, n, c)


def _reference(x):
    """Pure-JAX reference: f32 add of the sinusoidal table, cast last."""
    _, _, n, c = x.shape
    pe = _sinusoidal_pe(n, c)
    return (x.astype(jnp.float32) + pe[None, None]).astype(x.dtype)


if __name__ == "__main__":
    key = jax.random.PRNGKey(0)
    k1, k2, k3, k4 = jax.random.split(key, 4)

    # Test 1: module-shaped input [B, T, N, C] with small, non-lane-aligned C
    # (flat lane-dense path; N*C = 256 is a lane multiple, single step).
    B, T, N, C = 2, 4, 8, 32
    x = jax.random.normal(k1, (B, T, N, C), dtype=jnp.float32)
    out = spatial_encoder(x)
    jax.block_until_ready(out)
    assert out.shape == (B, T, N, C)
    assert jnp.allclose(out, _reference(x), atol=1e-5, rtol=1e-5), "flat path mismatch"

    # Test 2: flat path with forced small tiles -> multi-step grid over both
    # the BT (>=8-row blocks, ragged last row tile) and lane axes.
    x2 = jax.random.normal(k2, (2, 5, 8, 32), dtype=jnp.float32)
    out2 = spatial_encoder(x2, target_block_bytes=4 * 1024)
    jax.block_until_ready(out2)
    assert jnp.allclose(out2, _reference(x2), atol=1e-5, rtol=1e-5), "flat tiled mismatch"

    # Test 3: lane-aligned C, batch-folded 3D path (tb > 1), multi-step batch
    # grid with the batch axis outermost (size-1 N axis moved inner).
    x3 = jax.random.normal(k3, (2, 4, 8, 128), dtype=jnp.float32)
    out3 = spatial_encoder(x3, target_block_bytes=16 * 1024)
    jax.block_until_ready(out3)
    assert jnp.allclose(out3, _reference(x3), atol=1e-5, rtol=1e-5), "3d batch-tiled mismatch"

    # Test 4: lane-aligned C, N-tiled path with a ragged final N tile (N=44),
    # bf16 input (add in f32, cast last).
    x4 = jax.random.normal(k4, (2, 3, 44, 128), dtype=jnp.float32).astype(jnp.bfloat16)
    out4 = spatial_encoder(x4, target_block_bytes=8 * 1024)
    jax.block_until_ready(out4)
    assert jnp.allclose(out4.astype(jnp.float32),
                        _reference(x4).astype(jnp.float32),
                        atol=2e-2, rtol=2e-2), "bf16 N-tiled mismatch"

    print("KERNEL_OK")
</pallas_src>

<mosaic_0001>
module attributes {stable_mosaic.version = 11 : i64} {
  func.func @_add_pe_kernel(%arg0: i32, %arg1: i32, %arg2: memref<8x256xf32, #tpu.memory_space<vmem>>, %arg3: memref<1x256xf32, #tpu.memory_space<vmem>>, %arg4: memref<8x256xf32, #tpu.memory_space<vmem>>) attributes {dimension_semantics = [#tpu.dimension_semantics<parallel>, #tpu.dimension_semantics<parallel>], iteration_bounds = array<i64: 1, 1>, scalar_prefetch = 0 : i64, scratch_operands = 0 : i64, tpu.core_type = #tpu.core_type<tc>, window_params = [{transform_indices = @transform_0, window_bounds = array<i64: 8, 256>}, {transform_indices = @transform_1, window_bounds = array<i64: 1, 256>}, {transform_indices = @transform_2, window_bounds = array<i64: 8, 256>}]} {
    %c0 = arith.constant 0 : index
    %c0_0 = arith.constant 0 : index
    %0 = vector.load %arg2[%c0, %c0_0] : memref<8x256xf32, #tpu.memory_space<vmem>>, vector<8x256xf32>
    %c0_1 = arith.constant 0 : index
    %c0_2 = arith.constant 0 : index
    %1 = vector.load %arg3[%c0_1, %c0_2] : memref<1x256xf32, #tpu.memory_space<vmem>>, vector<1x256xf32>
    %2 = vector.broadcast %1 : vector<1x256xf32> to vector<8x256xf32>
    %3 = arith.addf %0, %2 : vector<8x256xf32>
    %c0_3 = arith.constant 0 : index
    %c0_4 = arith.constant 0 : index
    %4 = vector.load %arg4[%c0_3, %c0_4] : memref<8x256xf32, #tpu.memory_space<vmem>>, vector<8x256xf32>
    tpu.vector_store %arg4[%c0_3, %c0_4], %3 {strides = array<i32>} : memref<8x256xf32, #tpu.memory_space<vmem>>, vector<8x256xf32>,
    return
  }
  func.func @transform_0(%arg0: i32, %arg1: i32) -> (i32, i32) {
    %c0_i32 = arith.constant 0 : i32
    return %arg0, %arg1 : i32, i32
  }
  func.func @transform_1(%arg0: i32, %arg1: i32) -> (i32, i32) {
    %c0_i32 = arith.constant 0 : i32
    %c0_i32_0 = arith.constant 0 : i32
    return %c0_i32, %arg1 : i32, i32
  }
  func.func @transform_2(%arg0: i32, %arg1: i32) -> (i32, i32) {
    %c0_i32 = arith.constant 0 : i32
    return %arg0, %arg1 : i32, i32
  }
}

</mosaic_0001>

<llo_original>
// kernel: tpu_custom_call.1
$region0: #{tpu_custom_call.1}
  #allocation0 [shape = 'u32[]', space=smem, size = 0x4, offset = 0x4, fixed_abs, tag = 'smem constant byte address 0x4 - core index']
  #allocation1 [shape = 'u32[144,128]{1,0:T(1,128)}', space=vmem, size = 0x12000, scoped, tag = 'internal scratch']
  %s0 = inlined_call_operand.hbm [shape: f32[8,256], index: 0, kind: input, shape index: {}]
  %s1 = inlined_call_operand.vmem [shape: f32[1,256], index: 1, kind: input, shape index: {}]
  %s2 = inlined_call_operand.hbm [shape: f32[8,256], index: 2, kind: output, shape index: {}]
  %s3 = sld [smem:[#allocation0]]
  $region22: #{tpu_custom_call.1} parent=0
    _
  %s5 = ssub.s32 1, %s3
  %s6 = scalar_select 0, %s5, %s3
  $region1: #{tpu_custom_call.1} parent=0
    #allocation2 [shape = 'u8[8192]{0}', space=vmem, size = 0x2000, scoped, tag = 'input window, operand 0, single buffered']
    #allocation3 [shape = 's32[1]{0}', space=sflag, size = 0x4, scoped, tag = 'scoped memory for tpu_custom_call.1']
    #allocation4 [shape = 's32[1]{0}', space=sflag, size = 0x4, scoped, tag = 'scoped memory for tpu_custom_call.1']
    #allocation5 [shape = 'u8[8192]{0}', space=vmem, size = 0x2000, scoped, tag = 'output window, operand 0, single buffered']
    %7 = vsyncpa [#allocation3], 0
    %8 = vsyncpa [#allocation4], 0
    // Predicated region
    $region2: #{tpu_custom_call.1} parent=1 // pred_check
      _
    $region3: #{tpu_custom_call.1} parent=1 // pred_check_branch
      %10 = sbr.rel (0) target = $region5
    $region4: #{tpu_custom_call.1} parent=1 // pred_region
      %s12 = ssub.s32 256, 256
      %13 = vsyncadd [#allocation3], %s12
      %s15 = sshll.u32 [#allocation2], 4
      %s16 = int_to_ptr.vmem [resolvable:$true] %s15
      %18 = dma.hbm_to_vmem [thread:$0]  %s0, 256, %s16, [#allocation3]
    $region5: #{tpu_custom_call.1} parent=1 // pred_fallthru
      _
    // Predicated region
    $region6: #{tpu_custom_call.1} parent=1 // pred_check
      _
    $region7: #{tpu_custom_call.1} parent=1 // pred_check_branch
      %20 = sbr.rel (0) target = $region9
    $region8: #{tpu_custom_call.1} parent=1 // pred_region
      _
    $region9: #{tpu_custom_call.1} parent=1 // pred_fallthru
      _
    // Predicated region
    $region10: #{tpu_custom_call.1} parent=1 // pred_check
      _
    $region11: #{tpu_custom_call.1} parent=1 // pred_check_branch
      %22 = sbr.rel (0) target = $region13
    $region12: #{tpu_custom_call.1} parent=1 // pred_region
      %23 = dma.done [#allocation3], 256
    $region13: #{tpu_custom_call.1} parent=1 // pred_fallthru
      _
    %v24 = vld [vmem:[#allocation2] sm:$0xff]
    %v25 = vld [vmem:[#allocation2 + $0x8] sm:$0xff]
    %v26 = vld [vmem:[%s1] sm:$0x3]
    %v28 = vlaneseq
    %v29 = vshrl.u32 %v28, 7
    %v30 = vsub.s32 0, %v29
    %v31 = vrot.slane %v26, %v30
    %v32 = vlaneseq
    %v33 = vshrl.u32 %v32, 7
    %v34 = vsub.s32 1, %v33
    %v35 = vrot.slane %v26, %v34
    %v38 = vadd.f32 %v24, %v31
    %v39 = vadd.f32 %v25, %v35
    %40 = vst [vmem:[#allocation5] sm:$0xff] %v38
    %41 = vst [vmem:[#allocation5 + $0x8] sm:$0xff] %v39
    // Predicated region
    $region14: #{tpu_custom_call.1} parent=1 // pred_check
      _
    $region15: #{tpu_custom_call.1} parent=1 // pred_check_branch
      %43 = sbr.rel (0) target = $region17
    $region16: #{tpu_custom_call.1} parent=1 // pred_region
      %s45 = ssub.s32 256, 256
      %46 = vsyncadd [#allocation4], %s45
      %s48 = sshll.u32 [#allocation5], 4
      %s49 = int_to_ptr.vmem [resolvable:$true] %s48
      %51 = dma.vmem_to_hbm [thread:$0]  %s49, 256, %s2, [#allocation4]
    $region17: #{tpu_custom_call.1} parent=1 // pred_fallthru
      _
    // Predicated region
    $region18: #{tpu_custom_call.1} parent=1 // pred_check
      _
    $region19: #{tpu_custom_call.1} parent=1 // pred_check_branch
      %53 = sbr.rel (0) target = $region21
    $region20: #{tpu_custom_call.1} parent=1 // pred_region
      %54 = dma.done [#allocation4], 256
    $region21: #{tpu_custom_call.1} parent=1 // pred_fallthru
      _
    %55 = vsyncpa [#allocation3], 1
    %56 = vsyncpa [#allocation4], 1

</llo_original>
